<compile_context>
chip_gen: v7x
topology: tpu7x:2x2x1
jax: 0.10.0
libtpu: 0.0.40
codegen_flags: <defaults>
</compile_context>

<pallas_src>
import functools

import jax
import jax.numpy as jnp
from jax import lax
from jax.experimental import pallas as pl
from jax.experimental.pallas import tpu as pltpu


def _round_up(x, m):
    return ((x + m - 1) // m) * m


# ---------------------------------------------------------------------------
# Kernel: fused 4-layer MLP + fused dueling head for one batch tile.
# ---------------------------------------------------------------------------
def _dueling_qn_kernel(x_ref, w1_ref, w2_ref, w3_ref, w4_ref, wh_ref, b_ref,
                       out_ref, sums_ref, *, valid_b):
    """x_ref: (TB, S) bf16 state tile.  w*_ref: bf16 weights [in, out], lane-padded to
    multiples of 128; wh_ref is the fused head weight (D4, HP) = [values|advantages|0].
    b_ref: (1, D1+D2+D3+D4+HP) f32, all biases concatenated.
    out_ref: (TB, HOUT) f32 narrow head output ([v | a | 0-pad to HOUT lanes]).
    sums_ref: (8, HOUT) f32; row 0 holds the masked per-tile column sums."""
    d1 = w1_ref.shape[1]
    d2 = w2_ref.shape[1]
    d3 = w3_ref.shape[1]
    d4 = w4_ref.shape[1]
    dh = wh_ref.shape[1]
    o2 = d1
    o3 = o2 + d2
    o4 = o3 + d3
    oh = o4 + d4
    tb, hout = out_ref.shape

    def dense(h, w_ref, b_off, b_len, relu):
        # bf16 operands on the MXU, f32 accumulation; bias add + ReLU in f32 on the VPU.
        acc = jnp.dot(h, w_ref[...], preferred_element_type=jnp.float32)
        acc = acc + b_ref[:, b_off:b_off + b_len]
        if relu:
            # Downcast at the producer: halves the live inter-layer intermediate.
            return jnp.maximum(acc, 0.0).astype(jnp.bfloat16)
        return acc

    h = dense(x_ref[...], w1_ref, 0, d1, True)
    h = dense(h, w2_ref, o2, d2, True)
    h = dense(h, w3_ref, o3, d3, True)
    h = dense(h, w4_ref, o4, d4, True)
    head = dense(h, wh_ref, oh, dh, False)          # (TB, HP) f32, fused [v | a | 0-pad]

    # Narrow writeback: only the first HOUT lanes are meaningful.
    head_n = head[:, :hout]
    out_ref[...] = head_n

    # Masked per-tile column sums (batch-padding rows excluded) -> global mean in JAX.
    rows = pl.program_id(0) * tb + lax.broadcasted_iota(jnp.int32, head_n.shape, 0)
    psum = jnp.sum(jnp.where(rows < valid_b, head_n, 0.0), axis=0, keepdims=True)
    srow = lax.broadcasted_iota(jnp.int32, sums_ref.shape, 0)
    sums_ref[...] = jnp.where(srow == 0, psum, 0.0)


# ---------------------------------------------------------------------------
# Parameter preparation: pad to lane-dense widths, fuse heads, cast to bf16.
# ---------------------------------------------------------------------------
def prepare_params(params, *, compute_dtype=jnp.bfloat16):
    """Pad/cast natural-shape f32 params (weights pre-transposed [in, out]) into
    kernel-ready buffers. Zero padding keeps results bit-identical (ReLU(0)=0)."""
    S, H1 = params["w1"].shape
    H2 = params["w2"].shape[1]
    H3 = params["w3"].shape[1]
    H4 = params["w4"].shape[1]
    A = params["wa"].shape[1]

    D1 = _round_up(H1, 128)
    D2 = _round_up(H2, 128)
    D3 = _round_up(H3, 128)
    D4 = _round_up(H4, 128)
    HP = _round_up(1 + A, 128)

    def pad2(w, rows, cols):
        return jnp.pad(w, ((0, rows - w.shape[0]), (0, cols - w.shape[1])))

    w1 = pad2(params["w1"], S, D1).astype(compute_dtype)
    w2 = pad2(params["w2"], D1, D2).astype(compute_dtype)
    w3 = pad2(params["w3"], D2, D3).astype(compute_dtype)
    w4 = pad2(params["w4"], D3, D4).astype(compute_dtype)
    wh = pad2(jnp.concatenate([params["wv"], params["wa"]], axis=1), D4, HP
              ).astype(compute_dtype)

    biases = jnp.concatenate([
        pad2(params["b1"], 1, D1),
        pad2(params["b2"], 1, D2),
        pad2(params["b3"], 1, D3),
        pad2(params["b4"], 1, D4),
        pad2(jnp.concatenate([params["bv"], params["ba"]], axis=1), 1, HP),
    ], axis=1).astype(jnp.float32)

    return (w1, w2, w3, w4, wh, biases)


# ---------------------------------------------------------------------------
# Forward wrapper.
# ---------------------------------------------------------------------------
@functools.partial(jax.jit, static_argnames=("action_number", "block_b"))
def dueling_qn_forward(state, kernel_params, *, action_number, block_b=4096):
    """state: [B, state_number] f32. kernel_params: output of prepare_params."""
    w1, w2, w3, w4, wh, biases = kernel_params
    B, S = state.shape
    A = action_number
    HOUT = max(8, _round_up(1 + A, 8))   # narrow head output width (lanes)

    # Batch tile: big (amortizes ~0.35us/step grid overhead) but split so that there are
    # >=2 grid steps whenever possible (feeds v7x's 2nd TensorCore). Multiple of 16 so
    # bf16 input tiles stay sublane-aligned.
    block_b = max(16, _round_up(block_b, 16))
    TB = min(block_b, max(16, _round_up((B + 1) // 2, 16)))
    B_pad = _round_up(B, TB)
    grid = (B_pad // TB,)

    state = state.astype(jnp.bfloat16)            # halve state DMA
    if B_pad != B:
        state = jnp.pad(state, ((0, B_pad - B), (0, 0)))

    def const_spec(shape):
        # Weights/biases: same block every grid step -> stay resident in VMEM.
        return pl.BlockSpec(shape, lambda b: (0, 0))

    D1, D2, D3, D4, HP = w1.shape[1], w2.shape[1], w3.shape[1], w4.shape[1], wh.shape[1]
    flops = 2 * B_pad * (S * D1 + D1 * D2 + D2 * D3 + D3 * D4 + D4 * HP)
    bytes_accessed = (
        sum(int(a.size) * a.dtype.itemsize for a in (w1, w2, w3, w4, wh, biases))
        + B_pad * S * 2 + B_pad * HOUT * 4 + grid[0] * 8 * HOUT * 4)

    head, sums = pl.pallas_call(
        functools.partial(_dueling_qn_kernel, valid_b=B),
        out_shape=(
            jax.ShapeDtypeStruct((B_pad, HOUT), jnp.float32),
            jax.ShapeDtypeStruct((grid[0] * 8, HOUT), jnp.float32),
        ),
        grid=grid,
        in_specs=[
            pl.BlockSpec((TB, S), lambda b: (b, 0)),   # state: tiled over batch
            const_spec(w1.shape),
            const_spec(w2.shape),
            const_spec(w3.shape),
            const_spec(w4.shape),
            const_spec(wh.shape),
            const_spec(biases.shape),
        ],
        out_specs=[
            pl.BlockSpec((TB, HOUT), lambda b: (b, 0)),   # narrow head writeback
            pl.BlockSpec((8, HOUT), lambda b: (b, 0)),    # per-tile column sums
        ],
        compiler_params=pltpu.CompilerParams(dimension_semantics=("parallel",)),
        cost_estimate=pl.CostEstimate(flops=flops, transcendentals=0,
                                      bytes_accessed=bytes_accessed),
    )(state, w1, w2, w3, w4, wh, biases)

    # Global advantage mean (PyTorch .mean() over all B*A elements) from the in-kernel
    # masked partial sums; the combine reads the narrow head output exactly once.
    values = head[:B, 0:1]
    advantages = head[:B, 1:1 + A]
    adv_mean = jnp.sum(sums[:, 1:1 + A]) / (B * A)
    return values + (advantages - adv_mean)


# ---------------------------------------------------------------------------
# Init + numerics-matched pure-JAX reference.
# ---------------------------------------------------------------------------
def init_params(key, state_number, hidlyr_nodes, action_number):
    """Deterministic synthetic init. Weights stored pre-transposed as [in, out]."""
    dims = [
        ("w1", "b1", state_number, hidlyr_nodes),
        ("w2", "b2", hidlyr_nodes, hidlyr_nodes * 2),
        ("w3", "b3", hidlyr_nodes * 2, hidlyr_nodes * 4),
        ("w4", "b4", hidlyr_nodes * 4, hidlyr_nodes * 8),
        ("wv", "bv", hidlyr_nodes * 8, 1),
        ("wa", "ba", hidlyr_nodes * 8, action_number),
    ]
    params = {}
    for (wname, bname, fan_in, fan_out) in dims:
        key, kw, kb = jax.random.split(key, 3)
        scale = 1.0 / jnp.sqrt(jnp.float32(fan_in))
        params[wname] = jax.random.normal(kw, (fan_in, fan_out), jnp.float32) * scale
        params[bname] = jax.random.normal(kb, (1, fan_out), jnp.float32) * scale
    return params


def reference_forward(state, params, compute_dtype=jnp.bfloat16):
    """Pure-JAX reference with the same mixed precision (bf16 operands, f32 accum)."""
    def dense(h, w, b, relu=True):
        acc = jnp.dot(h.astype(compute_dtype), w.astype(compute_dtype),
                      preferred_element_type=jnp.float32) + b
        return jnp.maximum(acc, 0.0) if relu else acc

    h = dense(state, params["w1"], params["b1"])
    h = dense(h, params["w2"], params["b2"])
    h = dense(h, params["w3"], params["b3"])
    h = dense(h, params["w4"], params["b4"])
    values = dense(h, params["wv"], params["bv"], relu=False)
    advantages = dense(h, params["wa"], params["ba"], relu=False)
    return values + (advantages - jnp.mean(advantages))


if __name__ == "__main__":
    # Small shapes consistent with the module: state dim 8, hidden 32 -> 32/64/128/256, 4 actions.
    STATE_NUMBER = 8
    HIDLYR_NODES = 32
    ACTION_NUMBER = 4

    key = jax.random.PRNGKey(0)
    key, kparams, kx1, kx2 = jax.random.split(key, 4)

    params = init_params(kparams, STATE_NUMBER, HIDLYR_NODES, ACTION_NUMBER)
    kernel_params = prepare_params(params)

    # Tiny batch (single tile) — primary check.
    B = 2
    state = jax.random.normal(kx1, (B, STATE_NUMBER), jnp.float32)
    out = dueling_qn_forward(state, kernel_params, action_number=ACTION_NUMBER)
    out = jax.block_until_ready(out)
    ref = reference_forward(state, params)
    assert out.shape == (B, ACTION_NUMBER), out.shape
    assert jnp.allclose(out, ref, atol=1e-3, rtol=1e-3), (out, ref)

    # Non-multiple batch (multi-tile grid + padded-row masking of the partial sums).
    B2 = 300
    state2 = jax.random.normal(kx2, (B2, STATE_NUMBER), jnp.float32)
    out2 = dueling_qn_forward(state2, kernel_params, action_number=ACTION_NUMBER)
    out2 = jax.block_until_ready(out2)
    ref2 = reference_forward(state2, params)
    assert out2.shape == (B2, ACTION_NUMBER), out2.shape
    assert jnp.allclose(out2, ref2, atol=1e-3, rtol=1e-3), (out2, ref2)

    print("KERNEL_OK")
</pallas_src>

<mosaic_0001>
module attributes {stable_mosaic.version = 11 : i64} {
  func.func @_dueling_qn_kernel(%arg0: i32, %arg1: memref<16x8xbf16, #tpu.memory_space<vmem>>, %arg2: memref<8x128xbf16, #tpu.memory_space<vmem>>, %arg3: memref<128x128xbf16, #tpu.memory_space<vmem>>, %arg4: memref<128x128xbf16, #tpu.memory_space<vmem>>, %arg5: memref<128x256xbf16, #tpu.memory_space<vmem>>, %arg6: memref<256x128xbf16, #tpu.memory_space<vmem>>, %arg7: memref<1x768xf32, #tpu.memory_space<vmem>>, %arg8: memref<16x8xf32, #tpu.memory_space<vmem>>, %arg9: memref<8x8xf32, #tpu.memory_space<vmem>>) attributes {dimension_semantics = [#tpu.dimension_semantics<parallel>], iteration_bounds = array<i64: 1>, scalar_prefetch = 0 : i64, scratch_operands = 0 : i64, tpu.core_type = #tpu.core_type<tc>, window_params = [{transform_indices = @transform_0, window_bounds = array<i64: 16, 8>}, {pipeline_mode = #tpu.pipeline_mode<synchronous>, transform_indices = @transform_1, window_bounds = array<i64: 8, 128>}, {pipeline_mode = #tpu.pipeline_mode<synchronous>, transform_indices = @transform_2, window_bounds = array<i64: 128, 128>}, {pipeline_mode = #tpu.pipeline_mode<synchronous>, transform_indices = @transform_3, window_bounds = array<i64: 128, 128>}, {pipeline_mode = #tpu.pipeline_mode<synchronous>, transform_indices = @transform_4, window_bounds = array<i64: 128, 256>}, {pipeline_mode = #tpu.pipeline_mode<synchronous>, transform_indices = @transform_5, window_bounds = array<i64: 256, 128>}, {pipeline_mode = #tpu.pipeline_mode<synchronous>, transform_indices = @transform_6, window_bounds = array<i64: 1, 768>}, {transform_indices = @transform_7, window_bounds = array<i64: 16, 8>}, {transform_indices = @transform_8, window_bounds = array<i64: 8, 8>}]} {
    %c0 = arith.constant 0 : index
    %c0_0 = arith.constant 0 : index
    %0 = vector.load %arg1[%c0, %c0_0] : memref<16x8xbf16, #tpu.memory_space<vmem>>, vector<16x8xbf16>
    %c0_1 = arith.constant 0 : index
    %c0_2 = arith.constant 0 : index
    %1 = vector.load %arg2[%c0_1, %c0_2] : memref<8x128xbf16, #tpu.memory_space<vmem>>, vector<8x128xbf16>
    %cst = arith.constant dense<0.000000e+00> : vector<16x128xf32>
    %2 = tpu.matmul %0, %1, %cst {dimension_numbers = #tpu.dot_dimension_numbers<[1], [0], [0], [1], [0, 0, 1, 1], [], []>} : vector<16x8xbf16>, vector<8x128xbf16>, vector<16x128xf32> -> vector<16x128xf32>
    %c0_3 = arith.constant 0 : index
    %c0_4 = arith.constant 0 : index
    %3 = vector.load %arg7[%c0_3, %c0_4] : memref<1x768xf32, #tpu.memory_space<vmem>>, vector<1x128xf32>
    %4 = vector.broadcast %3 : vector<1x128xf32> to vector<16x128xf32>
    %5 = arith.addf %2, %4 : vector<16x128xf32>
    %cst_5 = arith.constant 0.000000e+00 : f32
    %6 = vector.broadcast %cst_5 : f32 to vector<16x128xf32>
    %7 = arith.maximumf %5, %6 : vector<16x128xf32>
    %8 = arith.truncf %7 : vector<16x128xf32> to vector<16x128xbf16>
    %c0_6 = arith.constant 0 : index
    %c0_7 = arith.constant 0 : index
    %9 = vector.load %arg3[%c0_6, %c0_7] : memref<128x128xbf16, #tpu.memory_space<vmem>>, vector<128x128xbf16>
    %cst_8 = arith.constant dense<0.000000e+00> : vector<16x128xf32>
    %10 = tpu.matmul %8, %9, %cst_8 {dimension_numbers = #tpu.dot_dimension_numbers<[1], [0], [0], [1], [0, 0, 1, 1], [], []>} : vector<16x128xbf16>, vector<128x128xbf16>, vector<16x128xf32> -> vector<16x128xf32>
    %c0_9 = arith.constant 0 : index
    %c128 = arith.constant 128 : index
    %11 = vector.load %arg7[%c0_9, %c128] : memref<1x768xf32, #tpu.memory_space<vmem>>, vector<1x128xf32>
    %12 = vector.broadcast %11 : vector<1x128xf32> to vector<16x128xf32>
    %13 = arith.addf %10, %12 : vector<16x128xf32>
    %cst_10 = arith.constant 0.000000e+00 : f32
    %14 = vector.broadcast %cst_10 : f32 to vector<16x128xf32>
    %15 = arith.maximumf %13, %14 : vector<16x128xf32>
    %16 = arith.truncf %15 : vector<16x128xf32> to vector<16x128xbf16>
    %c0_11 = arith.constant 0 : index
    %c0_12 = arith.constant 0 : index
    %17 = vector.load %arg4[%c0_11, %c0_12] : memref<128x128xbf16, #tpu.memory_space<vmem>>, vector<128x128xbf16>
    %cst_13 = arith.constant dense<0.000000e+00> : vector<16x128xf32>
    %18 = tpu.matmul %16, %17, %cst_13 {dimension_numbers = #tpu.dot_dimension_numbers<[1], [0], [0], [1], [0, 0, 1, 1], [], []>} : vector<16x128xbf16>, vector<128x128xbf16>, vector<16x128xf32> -> vector<16x128xf32>
    %c0_14 = arith.constant 0 : index
    %c256 = arith.constant 256 : index
    %19 = vector.load %arg7[%c0_14, %c256] : memref<1x768xf32, #tpu.memory_space<vmem>>, vector<1x128xf32>
    %20 = vector.broadcast %19 : vector<1x128xf32> to vector<16x128xf32>
    %21 = arith.addf %18, %20 : vector<16x128xf32>
    %cst_15 = arith.constant 0.000000e+00 : f32
    %22 = vector.broadcast %cst_15 : f32 to vector<16x128xf32>
    %23 = arith.maximumf %21, %22 : vector<16x128xf32>
    %24 = arith.truncf %23 : vector<16x128xf32> to vector<16x128xbf16>
    %c0_16 = arith.constant 0 : index
    %c0_17 = arith.constant 0 : index
    %25 = vector.load %arg5[%c0_16, %c0_17] : memref<128x256xbf16, #tpu.memory_space<vmem>>, vector<128x256xbf16>
    %cst_18 = arith.constant dense<0.000000e+00> : vector<16x256xf32>
    %26 = tpu.matmul %24, %25, %cst_18 {dimension_numbers = #tpu.dot_dimension_numbers<[1], [0], [0], [1], [0, 0, 1, 1], [], []>} : vector<16x128xbf16>, vector<128x256xbf16>, vector<16x256xf32> -> vector<16x256xf32>
    %c0_19 = arith.constant 0 : index
    %c384 = arith.constant 384 : index
    %27 = vector.load %arg7[%c0_19, %c384] : memref<1x768xf32, #tpu.memory_space<vmem>>, vector<1x256xf32>
    %28 = vector.broadcast %27 : vector<1x256xf32> to vector<16x256xf32>
    %29 = arith.addf %26, %28 : vector<16x256xf32>
    %cst_20 = arith.constant 0.000000e+00 : f32
    %30 = vector.broadcast %cst_20 : f32 to vector<16x256xf32>
    %31 = arith.maximumf %29, %30 : vector<16x256xf32>
    %32 = arith.truncf %31 : vector<16x256xf32> to vector<16x256xbf16>
    %c0_21 = arith.constant 0 : index
    %c0_22 = arith.constant 0 : index
    %33 = vector.load %arg6[%c0_21, %c0_22] : memref<256x128xbf16, #tpu.memory_space<vmem>>, vector<256x128xbf16>
    %cst_23 = arith.constant dense<0.000000e+00> : vector<16x128xf32>
    %34 = tpu.matmul %32, %33, %cst_23 {dimension_numbers = #tpu.dot_dimension_numbers<[1], [0], [0], [1], [0, 0, 1, 1], [], []>} : vector<16x256xbf16>, vector<256x128xbf16>, vector<16x128xf32> -> vector<16x128xf32>
    %c0_24 = arith.constant 0 : index
    %c640 = arith.constant 640 : index
    %35 = vector.load %arg7[%c0_24, %c640] : memref<1x768xf32, #tpu.memory_space<vmem>>, vector<1x128xf32>
    %36 = vector.broadcast %35 : vector<1x128xf32> to vector<16x128xf32>
    %37 = arith.addf %34, %36 : vector<16x128xf32>
    %38 = vector.extract_strided_slice %37 {offsets = [0, 0], sizes = [16, 8], strides = [1, 1]} : vector<16x128xf32> to vector<16x8xf32>
    %c0_25 = arith.constant 0 : index
    %c0_26 = arith.constant 0 : index
    %39 = vector.load %arg8[%c0_25, %c0_26] : memref<16x8xf32, #tpu.memory_space<vmem>>, vector<16x8xf32>
    tpu.vector_store %arg8[%c0_25, %c0_26], %38 {strides = array<i32>} : memref<16x8xf32, #tpu.memory_space<vmem>>, vector<16x8xf32>,
    %c16_i32 = arith.constant 16 : i32
    %40 = arith.muli %arg0, %c16_i32 : i32
    %41 = tpu.iota {dimensions = array<i32: 0>} : vector<16x8xi32>
    %42 = vector.broadcast %40 : i32 to vector<16x8xi32>
    %43 = arith.addi %42, %41 : vector<16x8xi32>
    %c2_i32 = arith.constant 2 : i32
    %44 = vector.broadcast %c2_i32 : i32 to vector<16x8xi32>
    %45 = arith.cmpi slt, %43, %44 : vector<16x8xi32>
    %cst_27 = arith.constant 0.000000e+00 : f32
    %46 = vector.broadcast %cst_27 : f32 to vector<16x8xf32>
    %47 = arith.select %45, %38, %46 : vector<16x8xi1>, vector<16x8xf32>
    %cst_28 = arith.constant dense<0.000000e+00> : vector<8xf32>
    %48 = vector.multi_reduction <add>, %47, %cst_28 [0] : vector<16x8xf32> to vector<8xf32>
    %49 = vector.shape_cast %48 : vector<8xf32> to vector<1x8xf32>
    %50 = tpu.iota {dimensions = array<i32: 0>} : vector<8x8xi32>
    %c0_i32 = arith.constant 0 : i32
    %51 = vector.broadcast %c0_i32 : i32 to vector<8x8xi32>
    %52 = arith.cmpi eq, %50, %51 : vector<8x8xi32>
    %cst_29 = arith.constant 0.000000e+00 : f32
    %53 = vector.shape_cast %49 : vector<1x8xf32> to vector<1x8xf32>
    %54 = vector.broadcast %53 : vector<1x8xf32> to vector<8x8xf32>
    %55 = vector.broadcast %cst_29 : f32 to vector<8x8xf32>
    %56 = arith.select %52, %54, %55 : vector<8x8xi1>, vector<8x8xf32>
    %c0_30 = arith.constant 0 : index
    %c0_31 = arith.constant 0 : index
    %57 = vector.load %arg9[%c0_30, %c0_31] : memref<8x8xf32, #tpu.memory_space<vmem>>, vector<8x8xf32>
    tpu.vector_store %arg9[%c0_30, %c0_31], %56 {strides = array<i32>} : memref<8x8xf32, #tpu.memory_space<vmem>>, vector<8x8xf32>,
    return
  }
  func.func @transform_0(%arg0: i32) -> (i32, i32) {
    %c0_i32 = arith.constant 0 : i32
    %c0_i32_0 = arith.constant 0 : i32
    return %arg0, %c0_i32 : i32, i32
  }
  func.func @transform_1(%arg0: i32) -> (i32, i32) {
    %c0_i32 = arith.constant 0 : i32
    %c0_i32_0 = arith.constant 0 : i32
    %c0_i32_1 = arith.constant 0 : i32
    return %c0_i32, %c0_i32_0 : i32, i32
  }
  func.func @transform_2(%arg0: i32) -> (i32, i32) {
    %c0_i32 = arith.constant 0 : i32
    %c0_i32_0 = arith.constant 0 : i32
    %c0_i32_1 = arith.constant 0 : i32
    return %c0_i32, %c0_i32_0 : i32, i32
  }
  func.func @transform_3(%arg0: i32) -> (i32, i32) {
    %c0_i32 = arith.constant 0 : i32
    %c0_i32_0 = arith.constant 0 : i32
    %c0_i32_1 = arith.constant 0 : i32
    return %c0_i32, %c0_i32_0 : i32, i32
  }
  func.func @transform_4(%arg0: i32) -> (i32, i32) {
    %c0_i32 = arith.constant 0 : i32
    %c0_i32_0 = arith.constant 0 : i32
    %c0_i32_1 = arith.constant 0 : i32
    return %c0_i32, %c0_i32_0 : i32, i32
  }
  func.func @transform_5(%arg0: i32) -> (i32, i32) {
    %c0_i32 = arith.constant 0 : i32
    %c0_i32_0 = arith.constant 0 : i32
    %c0_i32_1 = arith.constant 0 : i32
    return %c0_i32, %c0_i32_0 : i32, i32
  }
  func.func @transform_6(%arg0: i32) -> (i32, i32) {
    %c0_i32 = arith.constant 0 : i32
    %c0_i32_0 = arith.constant 0 : i32
    %c0_i32_1 = arith.constant 0 : i32
    return %c0_i32, %c0_i32_0 : i32, i32
  }
  func.func @transform_7(%arg0: i32) -> (i32, i32) {
    %c0_i32 = arith.constant 0 : i32
    %c0_i32_0 = arith.constant 0 : i32
    return %arg0, %c0_i32 : i32, i32
  }
  func.func @transform_8(%arg0: i32) -> (i32, i32) {
    %c0_i32 = arith.constant 0 : i32
    %c0_i32_0 = arith.constant 0 : i32
    return %arg0, %c0_i32 : i32, i32
  }
}

</mosaic_0001>

<llo_original>
// kernel: dueling_qn_forward.1
$region0: #{dueling_qn_forward.1}
  #allocation0 [shape = 'u32[]', space=smem, size = 0x4, offset = 0x4, fixed_abs, tag = 'smem constant byte address 0x4 - core index']
  #allocation1 [shape = 'u32[144,128]{1,0:T(1,128)}', space=vmem, size = 0x12000, scoped, tag = 'internal scratch']
  %s0 = inlined_call_operand.vmem [shape: bf16[16,8], index: 0, kind: input, shape index: {}]
  %s1 = inlined_call_operand.vmem [shape: bf16[8,128], index: 1, kind: input, shape index: {}]
  %s2 = inlined_call_operand.hbm [shape: bf16[128,128], index: 2, kind: input, shape index: {}]
  %s3 = inlined_call_operand.hbm [shape: bf16[128,128], index: 3, kind: input, shape index: {}]
  %s4 = inlined_call_operand.hbm [shape: bf16[128,256], index: 4, kind: input, shape index: {}]
  %s5 = inlined_call_operand.hbm [shape: bf16[256,128], index: 5, kind: input, shape index: {}]
  %s6 = inlined_call_operand.vmem [shape: f32[1,768], index: 6, kind: input, shape index: {}]
  %s7 = inlined_call_operand.vmem [shape: f32[16,8], index: 7, kind: output, shape index: {0}]
  %s8 = inlined_call_operand.vmem [shape: f32[8,8], index: 8, kind: output, shape index: {1}]
  %9 = xla_tuple %s7, %s8
  %s10 = sld [smem:[#allocation0]]
  $region62: #{dueling_qn_forward.1} parent=0
    _
  %s12 = ssub.s32 1, %s10
  %s13 = scalar_select 0, %s12, %s10
  $region1: #{dueling_qn_forward.1} parent=0
    #allocation2 [shape = 'u8[32768]{0}', space=vmem, size = 0x8000, scoped, tag = 'input window, operand 2, single buffered']
    #allocation3 [shape = 's32[1]{0}', space=sflag, size = 0x4, scoped, tag = 'scoped memory for dueling_qn_forward.1']
    #allocation4 [shape = 'u8[32768]{0}', space=vmem, size = 0x8000, scoped, tag = 'input window, operand 3, single buffered']
    #allocation5 [shape = 's32[1]{0}', space=sflag, size = 0x4, scoped, tag = 'scoped memory for dueling_qn_forward.1']
    #allocation6 [shape = 'u8[65536]{0}', space=vmem, size = 0x10000, scoped, tag = 'input window, operand 4, single buffered']
    #allocation7 [shape = 'u8[65536]{0}', space=vmem, size = 0x10000, scoped, tag = 'input window, operand 5, single buffered']
    #allocation8 [shape = 's32[1]{0}', space=sflag, size = 0x4, scoped, tag = 'scoped memory for dueling_qn_forward.1']
    %14 = vsyncpa [#allocation3], 0
    %15 = vsyncpa [#allocation5], 0
    %16 = vsyncpa [#allocation8], 0
    // Predicated region
    $region2: #{dueling_qn_forward.1} parent=1 // pred_check
      _
    $region3: #{dueling_qn_forward.1} parent=1 // pred_check_branch
      %18 = sbr.rel (0) target = $region5
    $region4: #{dueling_qn_forward.1} parent=1 // pred_region
      _
    $region5: #{dueling_qn_forward.1} parent=1 // pred_fallthru
      _
    // Predicated region
    $region6: #{dueling_qn_forward.1} parent=1 // pred_check
      _
    $region7: #{dueling_qn_forward.1} parent=1 // pred_check_branch
      %20 = sbr.rel (0) target = $region9
    $region8: #{dueling_qn_forward.1} parent=1 // pred_region
      _
    $region9: #{dueling_qn_forward.1} parent=1 // pred_fallthru
      _
    // Predicated region
    $region10: #{dueling_qn_forward.1} parent=1 // pred_check
      _
    $region11: #{dueling_qn_forward.1} parent=1 // pred_check_branch
      %22 = sbr.rel (0) target = $region13
    $region12: #{dueling_qn_forward.1} parent=1 // pred_region
      %s24 = ssub.s32 1024, 1024
      %25 = vsyncadd [#allocation3], %s24
      %s26 = sshll.u32 [#allocation2], 4
      %s27 = int_to_ptr.vmem [resolvable:$true] %s26
      %32 = dma.hbm_to_vmem [thread:$0]  %s2, 1024, %s27, [#allocation3], 64, 64, 4
    $region13: #{dueling_qn_forward.1} parent=1 // pred_fallthru
      _
    // Predicated region
    $region14: #{dueling_qn_forward.1} parent=1 // pred_check
      _
    $region15: #{dueling_qn_forward.1} parent=1 // pred_check_branch
      %34 = sbr.rel (0) target = $region17
    $region16: #{dueling_qn_forward.1} parent=1 // pred_region
      %s36 = ssub.s32 1024, 1024
      %37 = vsyncadd [#allocation5], %s36
      %s38 = sshll.u32 [#allocation4], 4
      %s39 = int_to_ptr.vmem [resolvable:$true] %s38
      %44 = dma.hbm_to_vmem [thread:$0]  %s3, 1024, %s39, [#allocation5], 64, 64, 4
    $region17: #{dueling_qn_forward.1} parent=1 // pred_fallthru
      _
    // Predicated region
    $region18: #{dueling_qn_forward.1} parent=1 // pred_check
      _
    $region19: #{dueling_qn_forward.1} parent=1 // pred_check_branch
      %46 = sbr.rel (0) target = $region21
    $region20: #{dueling_qn_forward.1} parent=1 // pred_region
      %s48 = ssub.s32 2048, 2048
      %49 = vsyncadd [#allocation5], %s48
      %s50 = sshll.u32 [#allocation6], 4
      %s51 = int_to_ptr.vmem [resolvable:$true] %s50
      %56 = dma.hbm_to_vmem [thread:$0]  %s4, 2048, %s51, [#allocation5], 128, 128, 8
    $region21: #{dueling_qn_forward.1} parent=1 // pred_fallthru
      _
    // Predicated region
    $region22: #{dueling_qn_forward.1} parent=1 // pred_check
      _
    $region23: #{dueling_qn_forward.1} parent=1 // pred_check_branch
      %58 = sbr.rel (0) target = $region25
    $region24: #{dueling_qn_forward.1} parent=1 // pred_region
      %s60 = ssub.s32 2048, 2048
      %61 = vsyncadd [#allocation8], %s60
      %s62 = sshll.u32 [#allocation7], 4
      %s63 = int_to_ptr.vmem [resolvable:$true] %s62
      %68 = dma.hbm_to_vmem [thread:$0]  %s5, 2048, %s63, [#allocation8], 64, 64, 4
    $region25: #{dueling_qn_forward.1} parent=1 // pred_fallthru
      _
    // Predicated region
    $region26: #{dueling_qn_forward.1} parent=1 // pred_check
      _
    $region27: #{dueling_qn_forward.1} parent=1 // pred_check_branch
      %70 = sbr.rel (0) target = $region29
    $region28: #{dueling_qn_forward.1} parent=1 // pred_region
      _
    $region29: #{dueling_qn_forward.1} parent=1 // pred_fallthru
      _
    // Predicated region
    $region30: #{dueling_qn_forward.1} parent=1 // pred_check
      _
    $region31: #{dueling_qn_forward.1} parent=1 // pred_check_branch
      %72 = sbr.rel (0) target = $region33
    $region32: #{dueling_qn_forward.1} parent=1 // pred_region
      %73 = dma.done [#allocation3], 1024
    $region33: #{dueling_qn_forward.1} parent=1 // pred_fallthru
      _
    // Predicated region
    $region34: #{dueling_qn_forward.1} parent=1 // pred_check
      _
    $region35: #{dueling_qn_forward.1} parent=1 // pred_check_branch
      %75 = sbr.rel (0) target = $region37
    $region36: #{dueling_qn_forward.1} parent=1 // pred_region
      %76 = dma.done [#allocation5], 1024
    $region37: #{dueling_qn_forward.1} parent=1 // pred_fallthru
      _
    // Predicated region
    $region38: #{dueling_qn_forward.1} parent=1 // pred_check
      _
    $region39: #{dueling_qn_forward.1} parent=1 // pred_check_branch
      %78 = sbr.rel (0) target = $region41
    $region40: #{dueling_qn_forward.1} parent=1 // pred_region
      %79 = dma.done [#allocation5], 2048
    $region41: #{dueling_qn_forward.1} parent=1 // pred_fallthru
      _
    // Predicated region
    $region42: #{dueling_qn_forward.1} parent=1 // pred_check
      _
    $region43: #{dueling_qn_forward.1} parent=1 // pred_check_branch
      %81 = sbr.rel (0) target = $region45
    $region44: #{dueling_qn_forward.1} parent=1 // pred_region
      %82 = dma.done [#allocation8], 2048
    $region45: #{dueling_qn_forward.1} parent=1 // pred_fallthru
      _
    %v84 = vld [vmem:[%s0] sm:$0xf]
    %v85 = vld [vmem:[%s0 + $0x4] sm:$0xf]
    %v86 = vld [vmem:[%s1] sm:$0xf]
    %v87 = vld [vmem:[%s6] sm:$0x1]
    %v89 = vlaneseq
    %v90 = vshrl.u32 %v89, 7
    %v91 = vsub.s32 0, %v90
    %v92 = vrot.slane %v87, %v91
    %v96 = vunpack.c.l.b16 %v84
    %v97 = vunpack.c.l.b16 %v85
    %v98 = vpack.c.b16 %v97, %v96
    %vm99 = vcmask 64512
    %v101 = vsel %vm99, %v98, 0
    %vm103 = vcmask 1043456
    %v105 = vsel %vm103, %v86, 0
    %107 = vmatprep.subr.bf16.mxu0 0
    %108 = vmatpush1.bf16.msra.mxu0 %v105
    %109 = vmatprep.subr.bf16.mxu0 0
    %110 = vmatpush1.bf16.msra.mxu0 0
    %111 = vmatprep.subr.bf16.mxu0 0
    %112 = vmatpush1.bf16.msra.mxu0 0
    %113 = vmatprep.subr.bf16.mxu0 0
    %114 = vmatpush1.bf16.msra.mxu0 0
    %115 = vmatprep.subr.bf16.mxu0 0
    %116 = vmatpush1.bf16.msra.mxu0 0
    %117 = vmatprep.subr.bf16.mxu0 0
    %118 = vmatpush1.bf16.msra.mxu0 0
    %119 = vmatprep.subr.bf16.mxu0 0
    %120 = vmatpush1.bf16.msra.mxu0 0
    %121 = vmatprep.subr.bf16.mxu0 0
    %122 = vmatpush1.bf16.msra.mxu0 0
    %123 = vmatprep.subr.bf16.mxu0 0
    %124 = vmatpush1.bf16.msra.mxu0 0
    %125 = vmatprep.subr.bf16.mxu0 0
    %126 = vmatpush1.bf16.msra.mxu0 0
    %127 = vmatprep.subr.bf16.mxu0 0
    %128 = vmatpush1.bf16.msra.mxu0 0
    %129 = vmatprep.subr.bf16.mxu0 0
    %130 = vmatpush1.bf16.msra.mxu0 0
    %131 = vmatprep.subr.bf16.mxu0 0
    %132 = vmatpush1.bf16.msra.mxu0 0
    %133 = vmatprep.subr.bf16.mxu0 0
    %134 = vmatpush1.bf16.msra.mxu0 0
    %135 = vmatprep.subr.bf16.mxu0 0
    %136 = vmatpush1.bf16.msra.mxu0 0
    %137 = vmatprep.subr.bf16.mxu0 0
    %138 = vmatpush1.bf16.msra.mxu0 0
    %139 = vmatprep.mubr.bf16.mxu0 0
    %140 = vmatmul.mubr.bf16.gmra.mrb[0].mxu0 %v101
    %v141 = vpop.f32.mrb[0].mxu0
    %v142 = vadd.f32 %v92, %v141
    %v143 = vpop.f32.mrb[0].mxu0
    %v144 = vpop.f32.mrb[0].mxu0
    %v145 = vadd.f32 %v92, %v144
    %v146 = vpop.f32.mrb[0].mxu0
    %147 = vdwg.mxu0
    %v148 = vmax.f32 %v142, 0.0
    %v149 = vmax.f32 %v145, 0.0
    %v150 = vpack.c.bf16 %v149, %v148
    %v151 = vld [vmem:[#allocation2] sm:$0xf]
    %v152 = vld [vmem:[#allocation2 + $0x4] sm:$0xf]
    %v153 = vld [vmem:[#allocation2 + $0x8] sm:$0xf]
    %v154 = vld [vmem:[#allocation2 + $0xc] sm:$0xf]
    %v155 = vld [vmem:[#allocation2 + $0x10] sm:$0xf]
    %v156 = vld [vmem:[#allocation2 + $0x14] sm:$0xf]
    %v157 = vld [vmem:[#allocation2 + $0x18] sm:$0xf]
    %v158 = vld [vmem:[#allocation2 + $0x1c] sm:$0xf]
    %v159 = vld [vmem:[#allocation2 + $0x20] sm:$0xf]
    %v160 = vld [vmem:[#allocation2 + $0x24] sm:$0xf]
    %v161 = vld [vmem:[#allocation2 + $0x28] sm:$0xf]
    %v162 = vld [vmem:[#allocation2 + $0x2c] sm:$0xf]
    %v163 = vld [vmem:[#allocation2 + $0x30] sm:$0xf]
    %v164 = vld [vmem:[#allocation2 + $0x34] sm:$0xf]
    %v165 = vld [vmem:[#allocation2 + $0x38] sm:$0xf]
    %v166 = vld [vmem:[#allocation2 + $0x3c] sm:$0xf]
    %v167 = vld [vmem:[%s6 + $0x1] sm:$0x1]
    %v169 = vlaneseq
    %v170 = vshrl.u32 %v169, 7
    %v171 = vsub.s32 0, %v170
    %v172 = vrot.slane %v167, %v171
    %v190 = vunpack.c.l.b16 %v151
    %v191 = vunpack.c.l.b16 %v152
    %v192 = vunpack.c.l.b16 %v153
    %v193 = vunpack.c.l.b16 %v154
    %v194 = vunpack.c.l.b16 %v155
    %v195 = vunpack.c.l.b16 %v156
    %v196 = vunpack.c.l.b16 %v157
    %v197 = vunpack.c.l.b16 %v158
    %v198 = vunpack.c.l.b16 %v159
    %v199 = vunpack.c.l.b16 %v160
    %v200 = vunpack.c.l.b16 %v161
    %v201 = vunpack.c.l.b16 %v162
    %v202 = vunpack.c.l.b16 %v163
    %v203 = vunpack.c.l.b16 %v164
    %v204 = vunpack.c.l.b16 %v165
    %v205 = vunpack.c.l.b16 %v166
    %v206 = vpack.c.b16 %v191, %v190
    %v207 = vpack.c.b16 %v193, %v192
    %v208 = vpack.c.b16 %v195, %v194
    %v209 = vpack.c.b16 %v197, %v196
    %v210 = vpack.c.b16 %v199, %v198
    %v211 = vpack.c.b16 %v201, %v200
    %v212 = vpack.c.b16 %v203, %v202
    %v213 = vpack.c.b16 %v205, %v204
    %222 = vmatprep.subr.bf16.mxu0 0
    %223 = vmatpush1.bf16.msra.mxu0 %v206
    %224 = vmatprep.subr.bf16.mxu0 0
    %225 = vmatpush1.bf16.msra.mxu0 %v207
    %226 = vmatprep.subr.bf16.mxu0 0
    %227 = vmatpush1.bf16.msra.mxu0 %v208
    %228 = vmatprep.subr.bf16.mxu0 0
    %229 = vmatpush1.bf16.msra.mxu0 %v209
    %230 = vmatprep.subr.bf16.mxu0 0
    %231 = vmatpush1.bf16.msra.mxu0 %v210
    %232 = vmatprep.subr.bf16.mxu0 0
    %233 = vmatpush1.bf16.msra.mxu0 %v211
    %234 = vmatprep.subr.bf16.mxu0 0
    %235 = vmatpush1.bf16.msra.mxu0 %v212
    %236 = vmatprep.subr.bf16.mxu0 0
    %237 = vmatpush1.bf16.msra.mxu0 %v213
    %238 = vmatprep.subr.bf16.mxu0 0
    %239 = vmatpush1.bf16.msra.mxu0 0
    %240 = vmatprep.subr.bf16.mxu0 0
    %241 = vmatpush1.bf16.msra.mxu0 0
    %242 = vmatprep.subr.bf16.mxu0 0
    %243 = vmatpush1.bf16.msra.mxu0 0
    %244 = vmatprep.subr.bf16.mxu0 0
    %245 = vmatpush1.bf16.msra.mxu0 0
    %246 = vmatprep.subr.bf16.mxu0 0
    %247 = vmatpush1.bf16.msra.mxu0 0
    %248 = vmatprep.subr.bf16.mxu0 0
    %249 = vmatpush1.bf16.msra.mxu0 0
    %250 = vmatprep.subr.bf16.mxu0 0
    %251 = vmatpush1.bf16.msra.mxu0 0
    %252 = vmatprep.subr.bf16.mxu0 0
    %253 = vmatpush1.bf16.msra.mxu0 0
    %254 = vmatprep.mubr.bf16.mxu0 0
    %255 = vmatmul.mubr.bf16.gmra.mrb[0].mxu0 %v150
    %v256 = vpop.f32.mrb[0].mxu0
    %v257 = vadd.f32 %v172, %v256
    %v258 = vpop.f32.mrb[0].mxu0
    %v259 = vpop.f32.mrb[0].mxu0
    %v260 = vadd.f32 %v172, %v259
    %v261 = vpop.f32.mrb[0].mxu0
    %262 = vdwg.mxu0
    %v263 = vmax.f32 %v257, 0.0
    %v264 = vmax.f32 %v260, 0.0
    %v265 = vpack.c.bf16 %v264, %v263
    %v266 = vld [vmem:[#allocation4] sm:$0xf]
    %v267 = vld [vmem:[#allocation4 + $0x4] sm:$0xf]
    %v268 = vld [vmem:[#allocation4 + $0x8] sm:$0xf]
    %v269 = vld [vmem:[#allocation4 + $0xc] sm:$0xf]
    %v270 = vld [vmem:[#allocation4 + $0x10] sm:$0xf]
    %v271 = vld [vmem:[#allocation4 + $0x14] sm:$0xf]
    %v272 = vld [vmem:[#allocation4 + $0x18] sm:$0xf]
    %v273 = vld [vmem:[#allocation4 + $0x1c] sm:$0xf]
    %v274 = vld [vmem:[#allocation4 + $0x20] sm:$0xf]
    %v275 = vld [vmem:[#allocation4 + $0x24] sm:$0xf]
    %v276 = vld [vmem:[#allocation4 + $0x28] sm:$0xf]
    %v277 = vld [vmem:[#allocation4 + $0x2c] sm:$0xf]
    %v278 = vld [vmem:[#allocation4 + $0x30] sm:$0xf]
    %v279 = vld [vmem:[#allocation4 + $0x34] sm:$0xf]
    %v280 = vld [vmem:[#allocation4 + $0x38] sm:$0xf]
    %v281 = vld [vmem:[#allocation4 + $0x3c] sm:$0xf]
    %v282 = vld [vmem:[%s6 + $0x2] sm:$0x1]
    %v284 = vlaneseq
    %v285 = vshrl.u32 %v284, 7
    %v286 = vsub.s32 0, %v285
    %v287 = vrot.slane %v282, %v286
    %v305 = vunpack.c.l.b16 %v266
    %v306 = vunpack.c.l.b16 %v267
    %v307 = vunpack.c.l.b16 %v268
    %v308 = vunpack.c.l.b16 %v269
    %v309 = vunpack.c.l.b16 %v270
    %v310 = vunpack.c.l.b16 %v271
    %v311 = vunpack.c.l.b16 %v272
    %v312 = vunpack.c.l.b16 %v273
    %v313 = vunpack.c.l.b16 %v274
    %v314 = vunpack.c.l.b16 %v275
    %v315 = vunpack.c.l.b16 %v276
    %v316 = vunpack.c.l.b16 %v277
    %v317 = vunpack.c.l.b16 %v278
    %v318 = vunpack.c.l.b16 %v279
    %v319 = vunpack.c.l.b16 %v280
    %v320 = vunpack.c.l.b16 %v281
    %v321 = vpack.c.b16 %v306, %v305
    %v322 = vpack.c.b16 %v308, %v307
    %v323 = vpack.c.b16 %v310, %v309
    %v324 = vpack.c.b16 %v312, %v311
    %v325 = vpack.c.b16 %v314, %v313
    %v326 = vpack.c.b16 %v316, %v315
    %v327 = vpack.c.b16 %v318, %v317
    %v328 = vpack.c.b16 %v320, %v319
    %337 = vmatprep.subr.bf16.mxu0 0
    %338 = vmatpush1.bf16.msra.mxu0 %v321
    %339 = vmatprep.subr.bf16.mxu0 0
    %340 = vmatpush1.bf16.msra.mxu0 %v322
    %341 = vmatprep.subr.bf16.mxu0 0
    %342 = vmatpush1.bf16.msra.mxu0 %v323
    %343 = vmatprep.subr.bf16.mxu0 0
    %344 = vmatpush1.bf16.msra.mxu0 %v324
    %345 = vmatprep.subr.bf16.mxu0 0
    %346 = vmatpush1.bf16.msra.mxu0 %v325
    %347 = vmatprep.subr.bf16.mxu0 0
    %348 = vmatpush1.bf16.msra.mxu0 %v326
    %349 = vmatprep.subr.bf16.mxu0 0
    %350 = vmatpush1.bf16.msra.mxu0 %v327
    %351 = vmatprep.subr.bf16.mxu0 0
    %352 = vmatpush1.bf16.msra.mxu0 %v328
    %353 = vmatprep.subr.bf16.mxu0 0
    %354 = vmatpush1.bf16.msra.mxu0 0
    %355 = vmatprep.subr.bf16.mxu0 0
    %356 = vmatpush1.bf16.msra.mxu0 0
    %357 = vmatprep.subr.bf16.mxu0 0
    %358 = vmatpush1.bf16.msra.mxu0 0
    %359 = vmatprep.subr.bf16.mxu0 0
    %360 = vmatpush1.bf16.msra.mxu0 0
    %361 = vmatprep.subr.bf16.mxu0 0
    %362 = vmatpush1.bf16.msra.mxu0 0
    %363 = vmatprep.subr.bf16.mxu0 0
    %364 = vmatpush1.bf16.msra.mxu0 0
    %365 = vmatprep.subr.bf16.mxu0 0
    %366 = vmatpush1.bf16.msra.mxu0 0
    %367 = vmatprep.subr.bf16.mxu0 0
    %368 = vmatpush1.bf16.msra.mxu0 0
    %369 = vmatprep.mubr.bf16.mxu0 0
    %370 = vmatmul.mubr.bf16.gmra.mrb[0].mxu0 %v265
    %v371 = vpop.f32.mrb[0].mxu0
    %v372 = vadd.f32 %v287, %v371
    %v373 = vpop.f32.mrb[0].mxu0
    %v374 = vpop.f32.mrb[0].mxu0
    %v375 = vadd.f32 %v287, %v374
    %v376 = vpop.f32.mrb[0].mxu0
    %377 = vdwg.mxu0
    %v378 = vmax.f32 %v372, 0.0
    %v379 = vmax.f32 %v375, 0.0
    %v380 = vpack.c.bf16 %v379, %v378
    %v381 = vld [vmem:[#allocation6] sm:$0xff]
    %v382 = vld [vmem:[#allocation6 + $0x8] sm:$0xff]
    %v383 = vld [vmem:[#allocation6 + $0x10] sm:$0xff]
    %v384 = vld [vmem:[#allocation6 + $0x18] sm:$0xff]
    %v385 = vld [vmem:[#allocation6 + $0x20] sm:$0xff]
    %v386 = vld [vmem:[#allocation6 + $0x28] sm:$0xff]
    %v387 = vld [vmem:[#allocation6 + $0x30] sm:$0xff]
    %v388 = vld [vmem:[#allocation6 + $0x38] sm:$0xff]
    %v389 = vld [vmem:[#allocation6 + $0x40] sm:$0xff]
    %v390 = vld [vmem:[#allocation6 + $0x48] sm:$0xff]
    %v391 = vld [vmem:[#allocation6 + $0x50] sm:$0xff]
    %v392 = vld [vmem:[#allocation6 + $0x58] sm:$0xff]
    %v393 = vld [vmem:[#allocation6 + $0x60] sm:$0xff]
    %v394 = vld [vmem:[#allocation6 + $0x68] sm:$0xff]
    %v395 = vld [vmem:[#allocation6 + $0x70] sm:$0xff]
    %v396 = vld [vmem:[#allocation6 + $0x78] sm:$0xff]
    %v397 = vld [vmem:[%s6 + $0x3] sm:$0x3]
    %v399 = vlaneseq
    %v400 = vshrl.u32 %v399, 7
    %v401 = vsub.s32 0, %v400
    %v402 = vrot.slane %v397, %v401
    %v403 = vlaneseq
    %v404 = vshrl.u32 %v403, 7
    %v405 = vsub.s32 1, %v404
    %v406 = vrot.slane %v397, %v405
    %v425 = vunpack.c.l.b16 %v381
    %v426 = vunpack.c.h.b16 %v381
    %v427 = vunpack.c.l.b16 %v382
    %v428 = vunpack.c.h.b16 %v382
    %v429 = vunpack.c.l.b16 %v383
    %v430 = vunpack.c.h.b16 %v383
    %v431 = vunpack.c.l.b16 %v384
    %v432 = vunpack.c.h.b16 %v384
    %v433 = vunpack.c.l.b16 %v385
    %v434 = vunpack.c.h.b16 %v385
    %v435 = vunpack.c.l.b16 %v386
    %v436 = vunpack.c.h.b16 %v386
    %v437 = vunpack.c.l.b16 %v387
    %v438 = vunpack.c.h.b16 %v387
    %v439 = vunpack.c.l.b16 %v388
    %v440 = vunpack.c.h.b16 %v388
    %v441 = vunpack.c.l.b16 %v389
    %v442 = vunpack.c.h.b16 %v389
    %v443 = vunpack.c.l.b16 %v390
    %v444 = vunpack.c.h.b16 %v390
    %v445 = vunpack.c.l.b16 %v391
    %v446 = vunpack.c.h.b16 %v391
    %v447 = vunpack.c.l.b16 %v392
    %v448 = vunpack.c.h.b16 %v392
    %v449 = vunpack.c.l.b16 %v393
    %v450 = vunpack.c.h.b16 %v393
    %v451 = vunpack.c.l.b16 %v394
    %v452 = vunpack.c.h.b16 %v394
    %v453 = vunpack.c.l.b16 %v395
    %v454 = vunpack.c.h.b16 %v395
    %v455 = vunpack.c.l.b16 %v396
    %v456 = vunpack.c.h.b16 %v396
    %v457 = vpack.c.b16 %v427, %v425
    %v458 = vpack.c.b16 %v428, %v426
    %v459 = vpack.c.b16 %v431, %v429
    %v460 = vpack.c.b16 %v432, %v430
    %v461 = vpack.c.b16 %v435, %v433
    %v462 = vpack.c.b16 %v436, %v434
    %v463 = vpack.c.b16 %v439, %v437
    %v464 = vpack.c.b16 %v440, %v438
    %v465 = vpack.c.b16 %v443, %v441
    %v466 = vpack.c.b16 %v444, %v442
    %v467 = vpack.c.b16 %v447, %v445
    %v468 = vpack.c.b16 %v448, %v446
    %v469 = vpack.c.b16 %v451, %v449
    %v470 = vpack.c.b16 %v452, %v450
    %v471 = vpack.c.b16 %v455, %v453
    %v472 = vpack.c.b16 %v456, %v454
    %489 = vmatprep.subr.bf16.mxu0 %v458
    %490 = vmatpush1.bf16.msra.mxu0 %v457
    %491 = vmatprep.subr.bf16.mxu0 %v460
    %492 = vmatpush1.bf16.msra.mxu0 %v459
    %493 = vmatprep.subr.bf16.mxu0 %v462
    %494 = vmatpush1.bf16.msra.mxu0 %v461
    %495 = vmatprep.subr.bf16.mxu0 %v464
    %496 = vmatpush1.bf16.msra.mxu0 %v463
    %497 = vmatprep.subr.bf16.mxu0 %v466
    %498 = vmatpush1.bf16.msra.mxu0 %v465
    %499 = vmatprep.subr.bf16.mxu0 %v468
    %500 = vmatpush1.bf16.msra.mxu0 %v467
    %501 = vmatprep.subr.bf16.mxu0 %v470
    %502 = vmatpush1.bf16.msra.mxu0 %v469
    %503 = vmatprep.subr.bf16.mxu0 %v472
    %504 = vmatpush1.bf16.msra.mxu0 %v471
    %505 = vmatprep.subr.bf16.mxu0 0
    %506 = vmatpush1.bf16.msra.mxu0 0
    %507 = vmatprep.subr.bf16.mxu0 0
    %508 = vmatpush1.bf16.msra.mxu0 0
    %509 = vmatprep.subr.bf16.mxu0 0
    %510 = vmatpush1.bf16.msra.mxu0 0
    %511 = vmatprep.subr.bf16.mxu0 0
    %512 = vmatpush1.bf16.msra.mxu0 0
    %513 = vmatprep.subr.bf16.mxu0 0
    %514 = vmatpush1.bf16.msra.mxu0 0
    %515 = vmatprep.subr.bf16.mxu0 0
    %516 = vmatpush1.bf16.msra.mxu0 0
    %517 = vmatprep.subr.bf16.mxu0 0
    %518 = vmatpush1.bf16.msra.mxu0 0
    %519 = vmatprep.subr.bf16.mxu0 0
    %520 = vmatpush1.bf16.msra.mxu0 0
    %521 = vmatprep.mubr.bf16.mxu0 0
    %522 = vmatmul.mubr.bf16.gmra.mrb[0].mxu0 %v380
    %v523 = vpop.f32.mrb[0].mxu0
    %v524 = vadd.f32 %v402, %v523
    %v525 = vpop.f32.mrb[0].mxu0
    %v526 = vadd.f32 %v406, %v525
    %v527 = vpop.f32.mrb[0].mxu0
    %v528 = vadd.f32 %v402, %v527
    %v529 = vpop.f32.mrb[0].mxu0
    %v530 = vadd.f32 %v406, %v529
    %531 = vdwg.mxu0
    %v532 = vmax.f32 %v524, 0.0
    %v533 = vmax.f32 %v526, 0.0
    %v534 = vmax.f32 %v528, 0.0
    %v535 = vmax.f32 %v530, 0.0
    %v536 = vpack.c.bf16 %v534, %v532
    %v537 = vpack.c.bf16 %v535, %v533
    %v538 = vld [vmem:[#allocation7] sm:$0xf]
    %v539 = vld [vmem:[#allocation7 + $0x4] sm:$0xf]
    %v540 = vld [vmem:[#allocation7 + $0x8] sm:$0xf]
    %v541 = vld [vmem:[#allocation7 + $0xc] sm:$0xf]
    %v542 = vld [vmem:[#allocation7 + $0x10] sm:$0xf]
    %v543 = vld [vmem:[#allocation7 + $0x14] sm:$0xf]
    %v544 = vld [vmem:[#allocation7 + $0x18] sm:$0xf]
    %v545 = vld [vmem:[#allocation7 + $0x1c] sm:$0xf]
    %v546 = vld [vmem:[#allocation7 + $0x20] sm:$0xf]
    %v547 = vld [vmem:[#allocation7 + $0x24] sm:$0xf]
    %v548 = vld [vmem:[#allocation7 + $0x28] sm:$0xf]
    %v549 = vld [vmem:[#allocation7 + $0x2c] sm:$0xf]
    %v550 = vld [vmem:[#allocation7 + $0x30] sm:$0xf]
    %v551 = vld [vmem:[#allocation7 + $0x34] sm:$0xf]
    %v552 = vld [vmem:[#allocation7 + $0x38] sm:$0xf]
    %v553 = vld [vmem:[#allocation7 + $0x3c] sm:$0xf]
    %v554 = vld [vmem:[#allocation7 + $0x40] sm:$0xf]
    %v555 = vld [vmem:[#allocation7 + $0x44] sm:$0xf]
    %v556 = vld [vmem:[#allocation7 + $0x48] sm:$0xf]
    %v557 = vld [vmem:[#allocation7 + $0x4c] sm:$0xf]
    %v558 = vld [vmem:[#allocation7 + $0x50] sm:$0xf]
    %v559 = vld [vmem:[#allocation7 + $0x54] sm:$0xf]
    %v560 = vld [vmem:[#allocation7 + $0x58] sm:$0xf]
    %v561 = vld [vmem:[#allocation7 + $0x5c] sm:$0xf]
    %v562 = vld [vmem:[#allocation7 + $0x60] sm:$0xf]
    %v563 = vld [vmem:[#allocation7 + $0x64] sm:$0xf]
    %v564 = vld [vmem:[#allocation7 + $0x68] sm:$0xf]
    %v565 = vld [vmem:[#allocation7 + $0x6c] sm:$0xf]
    %v566 = vld [vmem:[#allocation7 + $0x70] sm:$0xf]
    %v567 = vld [vmem:[#allocation7 + $0x74] sm:$0xf]
    %v568 = vld [vmem:[#allocation7 + $0x78] sm:$0xf]
    %v569 = vld [vmem:[#allocation7 + $0x7c] sm:$0xf]
    %v570 = vld [vmem:[%s6 + $0x5] sm:$0x1]
    %v572 = vlaneseq
    %v573 = vshrl.u32 %v572, 7
    %v574 = vsub.s32 0, %v573
    %v575 = vrot.slane %v570, %v574
    %v609 = vunpack.c.l.b16 %v538
    %v610 = vunpack.c.l.b16 %v539
    %v611 = vunpack.c.l.b16 %v540
    %v612 = vunpack.c.l.b16 %v541
    %v613 = vunpack.c.l.b16 %v542
    %v614 = vunpack.c.l.b16 %v543
    %v615 = vunpack.c.l.b16 %v544
    %v616 = vunpack.c.l.b16 %v545
    %v617 = vunpack.c.l.b16 %v546
    %v618 = vunpack.c.l.b16 %v547
    %v619 = vunpack.c.l.b16 %v548
    %v620 = vunpack.c.l.b16 %v549
    %v621 = vunpack.c.l.b16 %v550
    %v622 = vunpack.c.l.b16 %v551
    %v623 = vunpack.c.l.b16 %v552
    %v624 = vunpack.c.l.b16 %v553
    %v625 = vunpack.c.l.b16 %v554
    %v626 = vunpack.c.l.b16 %v555
    %v627 = vunpack.c.l.b16 %v556
    %v628 = vunpack.c.l.b16 %v557
    %v629 = vunpack.c.l.b16 %v558
    %v630 = vunpack.c.l.b16 %v559
    %v631 = vunpack.c.l.b16 %v560
    %v632 = vunpack.c.l.b16 %v561
    %v633 = vunpack.c.l.b16 %v562
    %v634 = vunpack.c.l.b16 %v563
    %v635 = vunpack.c.l.b16 %v564
    %v636 = vunpack.c.l.b16 %v565
    %v637 = vunpack.c.l.b16 %v566
    %v638 = vunpack.c.l.b16 %v567
    %v639 = vunpack.c.l.b16 %v568
    %v640 = vunpack.c.l.b16 %v569
    %v641 = vpack.c.b16 %v610, %v609
    %v642 = vpack.c.b16 %v612, %v611
    %v643 = vpack.c.b16 %v614, %v613
    %v644 = vpack.c.b16 %v616, %v615
    %v645 = vpack.c.b16 %v618, %v617
    %v646 = vpack.c.b16 %v620, %v619
    %v647 = vpack.c.b16 %v622, %v621
    %v648 = vpack.c.b16 %v624, %v623
    %v649 = vpack.c.b16 %v626, %v625
    %v650 = vpack.c.b16 %v628, %v627
    %v651 = vpack.c.b16 %v630, %v629
    %v652 = vpack.c.b16 %v632, %v631
    %v653 = vpack.c.b16 %v634, %v633
    %v654 = vpack.c.b16 %v636, %v635
    %v655 = vpack.c.b16 %v638, %v637
    %v656 = vpack.c.b16 %v640, %v639
    %673 = vmatprep.subr.bf16.mxu0 0
    %674 = vmatpush1.bf16.msra.mxu0 %v641
    %675 = vmatprep.subr.bf16.mxu0 0
    %676 = vmatpush1.bf16.msra.mxu0 %v642
    %677 = vmatprep.subr.bf16.mxu0 0
    %678 = vmatpush1.bf16.msra.mxu0 %v643
    %679 = vmatprep.subr.bf16.mxu0 0
    %680 = vmatpush1.bf16.msra.mxu0 %v644
    %681 = vmatprep.subr.bf16.mxu0 0
    %682 = vmatpush1.bf16.msra.mxu0 %v645
    %683 = vmatprep.subr.bf16.mxu0 0
    %684 = vmatpush1.bf16.msra.mxu0 %v646
    %685 = vmatprep.subr.bf16.mxu0 0
    %686 = vmatpush1.bf16.msra.mxu0 %v647
    %687 = vmatprep.subr.bf16.mxu0 0
    %688 = vmatpush1.bf16.msra.mxu0 %v648
    %689 = vmatprep.subr.bf16.mxu0 0
    %690 = vmatpush1.bf16.msra.mxu0 %v649
    %691 = vmatprep.subr.bf16.mxu0 0
    %692 = vmatpush1.bf16.msra.mxu0 %v650
    %693 = vmatprep.subr.bf16.mxu0 0
    %694 = vmatpush1.bf16.msra.mxu0 %v651
    %695 = vmatprep.subr.bf16.mxu0 0
    %696 = vmatpush1.bf16.msra.mxu0 %v652
    %697 = vmatprep.subr.bf16.mxu0 0
    %698 = vmatpush1.bf16.msra.mxu0 %v653
    %699 = vmatprep.subr.bf16.mxu0 0
    %700 = vmatpush1.bf16.msra.mxu0 %v654
    %701 = vmatprep.subr.bf16.mxu0 0
    %702 = vmatpush1.bf16.msra.mxu0 %v655
    %703 = vmatprep.subr.bf16.mxu0 0
    %704 = vmatpush1.bf16.msra.mxu0 %v656
    %705 = vmatprep.mubr.bf16.mxu0 %v537
    %706 = vmatmul.mubr.bf16.gmra.mrb[0].mxu0 %v536
    %v707 = vpop.f32.mrb[0].mxu0
    %v708 = vadd.f32 %v575, %v707
    %v709 = vpop.f32.mrb[0].mxu0
    %v710 = vpop.f32.mrb[0].mxu0
    %v711 = vadd.f32 %v575, %v710
    %v712 = vpop.f32.mrb[0].mxu0
    %713 = vdwg.mxu0
    %714 = vst.msk [vmem:[%s7] sm:$0xff] %vm99, %v708
    %715 = vst.msk [vmem:[%s7 + $0x8] sm:$0xff] %vm99, %v711
    %s716 = smul.u32 0, 16
    %v717 = vlaneseq
    %v718 = vshrl.u32 %v717, 7
    %v719 = vadd.s32 %v718, 8
    %v720 = vstv %s716
    %v721 = vadd.s32 %v720, %v718
    %v722 = vadd.s32 %v720, %v719
    %vm723 = vcmp.lt.s32.totalorder %v721, 2
    %vm724 = vcmp.lt.s32.totalorder %v722, 2
    %v725 = vsel %vm723, %v708, 0.0
    %v726 = vsel %vm724, %v711, 0.0
    %v727 = vsel %vm99, %v725, 0.0
    %v728 = vsel %vm99, %v726, 0.0
    %v729 = vadd.f32 %v727, %v728
    %v730 = vrot.slane %v729, 4
    %v731 = vadd.f32 %v729, %v730
    %v732 = vrot.slane %v731, 2
    %v733 = vadd.f32 %v731, %v732
    %v734 = vrot.slane %v733, 1
    %v735 = vadd.f32 %v733, %v734
    %vm736 = vcmp.eq.s32.totalorder %v718, 0
    %v737 = vsel %vm736, %v735, 0.0
    %738 = vst.msk [vmem:[%s8] sm:$0xff] %vm99, %v737
    // Predicated region
    $region46: #{dueling_qn_forward.1} parent=1 // pred_check
      _
    $region47: #{dueling_qn_forward.1} parent=1 // pred_check_branch
      %740 = sbr.rel (0) target = $region49
    $region48: #{dueling_qn_forward.1} parent=1 // pred_region
      _
    $region49: #{dueling_qn_forward.1} parent=1 // pred_fallthru
      _
    // Predicated region
    $region50: #{dueling_qn_forward.1} parent=1 // pred_check
      _
    $region51: #{dueling_qn_forward.1} parent=1 // pred_check_branch
      %742 = sbr.rel (0) target = $region53
    $region52: #{dueling_qn_forward.1} parent=1 // pred_region
      _
    $region53: #{dueling_qn_forward.1} parent=1 // pred_fallthru
      _
    // Predicated region
    $region54: #{dueling_qn_forward.1} parent=1 // pred_check
      _
    $region55: #{dueling_qn_forward.1} parent=1 // pred_check_branch
      %744 = sbr.rel (0) target = $region57
    $region56: #{dueling_qn_forward.1} parent=1 // pred_region
      _
    $region57: #{dueling_qn_forward.1} parent=1 // pred_fallthru
      _
    // Predicated region
    $region58: #{dueling_qn_forward.1} parent=1 // pred_check
      _
    $region59: #{dueling_qn_forward.1} parent=1 // pred_check_branch
      %746 = sbr.rel (0) target = $region61
    $region60: #{dueling_qn_forward.1} parent=1 // pred_region
      _
    $region61: #{dueling_qn_forward.1} parent=1 // pred_fallthru
      _
    %747 = vsyncpa [#allocation3], 1
    %748 = vsyncpa [#allocation5], 1
    %749 = vsyncpa [#allocation8], 1

</llo_original>
